<compile_context>
chip_gen: v5e
topology: v5e:2x2
jax: 0.10.0
libtpu: 0.0.40
codegen_flags: <defaults>
</compile_context>

<pallas_src>
import jax
import jax.numpy as jnp
import numpy as np
from jax.experimental import pallas as pl
from jax.experimental.pallas import tpu as pltpu

BIG = 1e10


def cross_attn_pool_kernel(x_ref, q_ref, wl_ref, astart_ref, aend_ref,
                           w_ref, b_ref, out_ref):
    # x_ref:      (bb, D, N)  clip features, native (D, N) layout
    # q_ref:      (bb, L, D)  query token features
    # wl_ref:     (bb, 1, 1)  int32 word lengths
    # astart_ref: (M, 1)      int32 anchor start clip (shared over batch)
    # aend_ref:   (M, 1)      int32 anchor end clip   (shared over batch)
    # w_ref:      (1, D)      conv1d(k=1) weight, lane-dense
    # b_ref:      (1,)        conv1d bias (SMEM scalar)
    # out_ref:    (bb, M, D)
    bb, L, D = q_ref.shape
    N = x_ref.shape[2]
    M = astart_ref.shape[0]

    # ---- language attention pooling, vectorized over the whole bb slab ------
    # VPU multiply + lane (XLU) reduce for the D->1 projection; softmax math in
    # f32 on every generation (v5e has no bf16 VPU/EUP).
    q = q_ref[...].astype(jnp.float32)                               # (bb, L, D)
    w = w_ref[...].astype(jnp.float32)                               # (1, D)
    sim_l = jnp.sum(q * w, axis=2, keepdims=True) + b_ref[0]         # (bb, L, 1)

    tok = jax.lax.broadcasted_iota(jnp.int32, (bb, L, 1), 1)         # token pos
    wl = wl_ref[...]                                                 # (bb, 1, 1)
    sim_l = sim_l - jnp.where(tok >= wl, BIG, 0.0)                   # mask pads

    m_l = jnp.max(sim_l, axis=1, keepdims=True)                      # (bb, 1, 1)
    e_l = jnp.exp(sim_l - m_l)
    r_l = pl.reciprocal(jnp.sum(e_l, axis=1, keepdims=True), approx=True)
    scores_l = e_l * r_l                                             # (bb, L, 1)
    sent = jnp.sum(scores_l * q, axis=1, keepdims=True)              # (bb, 1, D)

    # ---- clip-window additive mask built in-kernel from (start, end) --------
    clip_pos = jax.lax.broadcasted_iota(jnp.int32, (M, N), 1)
    inside = (clip_pos >= astart_ref[...]) & (clip_pos <= aend_ref[...])
    cmask = jnp.where(inside, 0.0, BIG).astype(jnp.float32)          # (M, N)

    # ---- clip attention pooling, all bb batch rows batched together ---------
    # sim_c is a 1-row-per-batch matmul: keep it f32 (bf16 buys nothing on a
    # latency-bound 1-row MXU push and would perturb the softmax logits).
    x_f32 = x_ref[...].astype(jnp.float32)                           # (bb, D, N)
    sim_c = jnp.einsum('bod,bdn->bon', sent, x_f32,
                       preferred_element_type=jnp.float32)           # (bb, 1, N)
    sim = sim_c - cmask[None]                                        # (bb, M, N)
    m_c = jnp.max(sim, axis=2, keepdims=True)                        # (bb, M, 1)
    e_c = jnp.exp(sim - m_c)
    r_c = pl.reciprocal(jnp.sum(e_c, axis=2, keepdims=True), approx=True)

    # Fold the softmax normalization into the smaller operand (static choice):
    # scale scores (M*N mults) when D > N, otherwise scale pooled (M*D mults).
    scale_scores_first = D > N
    scores = e_c * r_c if scale_scores_first else e_c                # (bb, M, N)

    # scores (bb,M,N) contracted with x (bb,D,N) along N  ==  scores @ x^T.
    # bf16 MXU operands, f32 accumulation.
    pooled = jnp.einsum('bmn,bdn->bmd',
                        scores.astype(jnp.bfloat16),
                        x_ref[...].astype(jnp.bfloat16),
                        preferred_element_type=jnp.float32)          # (bb, M, D)
    if not scale_scores_first:
        pooled = pooled * r_c
    out_ref[...] = pooled.astype(out_ref.dtype)


def _choose_block_b(B, D, N, L, M, x_itemsize, q_itemsize, out_itemsize,
                    min_grid_steps=4, vmem_budget_bytes=24 << 20):
    """Pick the per-grid-step batch slab.

    Defaults are v7x-safe: >= min_grid_steps (=4) grid steps means >= 2 steps
    per TensorCore so the BlockSpec pipeline can overlap DMA with compute, and
    the double-buffered blocks are checked against a ~24 MiB budget (under the
    32 MiB scoped / 64 MiB physical VMEM of v7x).  On single-TensorCore
    v6e/v5e (128 MiB VMEM) pass min_grid_steps=2 and a larger budget to
    maximize the slab and amortize the ~0.35 us per-grid-step overhead.
    """
    fitting = []
    for bb in range(1, B + 1):
        if B % bb:
            continue
        blk_bytes = 2 * bb * (D * N * x_itemsize + L * D * q_itemsize
                              + M * D * out_itemsize + 4)
        if blk_bytes <= vmem_budget_bytes:
            fitting.append(bb)
    if not fitting:
        return 1
    for steps_floor in (min_grid_steps, 2, 1):
        good = [bb for bb in fitting if B // bb >= steps_floor]
        if good:
            return max(good)
    return 1


def cross_attention_pooling(x, queries, wordlens, anchors, w, b,
                            *, block_b=None, min_grid_steps=4,
                            vmem_budget_bytes=24 << 20):
    """x: (B, D, N) native layout; queries: (B, L, D); wordlens: length-B ints;
    anchors: (M, 3) int (id, start_clip, end_clip); w: (D, 1); b: (1, 1).
    Returns (B, M, D) in x.dtype."""
    B, D, N = x.shape
    L = queries.shape[1]
    anchors = jnp.asarray(anchors, dtype=jnp.int32)
    M = anchors.shape[0]

    a_start = anchors[:, 1:2]                                        # (M, 1)
    a_end = anchors[:, 2:3]                                          # (M, 1)
    wl3 = jnp.asarray(wordlens, dtype=jnp.int32).reshape(B, 1, 1)    # (B, 1, 1)
    w_row = jnp.reshape(w, (1, D)).astype(jnp.float32)               # lane-dense
    b_s = jnp.reshape(b, (1,)).astype(jnp.float32)                   # SMEM scalar

    out_dtype = x.dtype
    if block_b is None:
        block_b = _choose_block_b(
            B, D, N, L, M,
            jnp.dtype(x.dtype).itemsize, jnp.dtype(queries.dtype).itemsize,
            jnp.dtype(out_dtype).itemsize,
            min_grid_steps=min_grid_steps, vmem_budget_bytes=vmem_budget_bytes)
    if B % block_b != 0:
        raise ValueError(f"block_b={block_b} must divide batch size B={B}")
    grid = B // block_b

    return pl.pallas_call(
        cross_attn_pool_kernel,
        out_shape=jax.ShapeDtypeStruct((B, M, D), out_dtype),
        grid_spec=pltpu.PrefetchScalarGridSpec(
            num_scalar_prefetch=0,
            grid=(grid,),
            in_specs=[
                pl.BlockSpec((block_b, D, N), lambda bi: (bi, 0, 0)),   # x (native layout)
                pl.BlockSpec((block_b, L, D), lambda bi: (bi, 0, 0)),   # queries
                pl.BlockSpec((block_b, 1, 1), lambda bi: (bi, 0, 0)),   # wordlens
                pl.BlockSpec((M, 1), lambda bi: (0, 0)),                # anchor starts
                pl.BlockSpec((M, 1), lambda bi: (0, 0)),                # anchor ends
                pl.BlockSpec((1, D), lambda bi: (0, 0)),                # conv1d weight
                pl.BlockSpec(memory_space=pltpu.MemorySpace.SMEM),      # conv1d bias
            ],
            out_specs=pl.BlockSpec((block_b, M, D), lambda bi: (bi, 0, 0)),
        ),
        compiler_params=pltpu.CompilerParams(
            dimension_semantics=("parallel",)),
    )(x, queries, wl3, a_start, a_end, w_row, b_s)


def reference(x, queries, wordlens, anchors, w, b):
    """Pure-JAX (f32, exact-division) mirror of the PyTorch forward."""
    B, D, N = x.shape
    L = queries.shape[1]
    anchors = jnp.asarray(anchors, dtype=jnp.int32)
    pos_n = jnp.arange(N)[None, :]
    clip_mask = jnp.where((pos_n >= anchors[:, 1:2]) & (pos_n <= anchors[:, 2:3]),
                          0.0, BIG)                                  # (M, N)
    pos_l = jnp.arange(L)
    wl = jnp.asarray(wordlens, dtype=jnp.int32)
    q_mask = jnp.where(pos_l[None, :] >= wl[:, None], BIG, 0.0)      # (B, L)
    sim_l = jnp.einsum('bld,do->bol', queries, w) + b[0, 0]          # (B, 1, L)
    scores_l = jax.nn.softmax(sim_l - q_mask[:, None, :], axis=2)
    sent = jnp.einsum('bol,bld->bod', scores_l, queries)             # (B, 1, D)
    sim = jnp.einsum('bod,bdn->bon', sent, x) - clip_mask[None]      # (B, M, N)
    scores = jax.nn.softmax(sim, axis=2)
    return jnp.einsum('bmn,bdn->bmd', scores, x)                     # (B, M, D)


if __name__ == "__main__":
    # Small shapes consistent with the module's forward:
    B, D, N = 2, 32, 16          # batch, hidden_size, num_clips
    M = 4                        # num_anchors / num_proposals
    L = 8                        # max words in batch
    wordlens = [6, 8]

    key = jax.random.PRNGKey(0)
    kx, kq, kw, kb = jax.random.split(key, 4)
    x = jax.random.normal(kx, (B, D, N), dtype=jnp.float32)
    queries = jax.random.normal(kq, (B, L, D), dtype=jnp.float32)
    w = jax.random.normal(kw, (D, 1), dtype=jnp.float32) * 0.1
    b = jax.random.normal(kb, (1, 1), dtype=jnp.float32) * 0.1

    # (anchor_id, start_clip, end_clip) -- same role as __init__'s anchors.
    anchors = np.array([[0, 0, 3], [1, 4, 7], [2, 8, 11], [3, 12, 15]],
                       dtype=np.int32)

    out = cross_attention_pooling(x, queries, wordlens, anchors, w, b)
    out = jax.block_until_ready(out)

    ref = reference(x, queries, wordlens, anchors, w, b)
    # Tolerance absorbs bf16 MXU operands on the pooled matmul and the
    # approximate (EUP vrcp) softmax reciprocals vs. the exact-f32 reference.
    np.testing.assert_allclose(np.asarray(out), np.asarray(ref),
                               rtol=2e-2, atol=2e-2)

    print("KERNEL_OK")
</pallas_src>

<mosaic_0001>
module attributes {stable_mosaic.version = 11 : i64} {
  func.func @cross_attn_pool_kernel(%arg0: i32, %arg1: memref<1x32x16xf32, #tpu.memory_space<vmem>>, %arg2: memref<1x8x32xf32, #tpu.memory_space<vmem>>, %arg3: memref<1x1x1xi32, #tpu.memory_space<vmem>>, %arg4: memref<4x1xi32, #tpu.memory_space<vmem>>, %arg5: memref<4x1xi32, #tpu.memory_space<vmem>>, %arg6: memref<1x32xf32, #tpu.memory_space<vmem>>, %arg7: memref<1xf32, #tpu.memory_space<smem>>, %arg8: memref<1x4x32xf32, #tpu.memory_space<vmem>>) attributes {dimension_semantics = [#tpu.dimension_semantics<parallel>], iteration_bounds = array<i64: 2>, scalar_prefetch = 0 : i64, scratch_operands = 0 : i64, tpu.core_type = #tpu.core_type<tc>, window_params = [{transform_indices = @transform_0, window_bounds = array<i64: 1, 32, 16>}, {transform_indices = @transform_1, window_bounds = array<i64: 1, 8, 32>}, {transform_indices = @transform_2, window_bounds = array<i64: 1, 1, 1>}, {pipeline_mode = #tpu.pipeline_mode<synchronous>, transform_indices = @transform_3, window_bounds = array<i64: 4, 1>}, {pipeline_mode = #tpu.pipeline_mode<synchronous>, transform_indices = @transform_4, window_bounds = array<i64: 4, 1>}, {pipeline_mode = #tpu.pipeline_mode<synchronous>, transform_indices = @transform_5, window_bounds = array<i64: 1, 32>}, {transform_indices = @transform_6, window_bounds = array<i64: 1>}, {transform_indices = @transform_7, window_bounds = array<i64: 1, 4, 32>}]} {
    %c0 = arith.constant 0 : index
    %c0_0 = arith.constant 0 : index
    %c0_1 = arith.constant 0 : index
    %0 = vector.load %arg2[%c0, %c0_0, %c0_1] : memref<1x8x32xf32, #tpu.memory_space<vmem>>, vector<1x8x32xf32>
    %c0_2 = arith.constant 0 : index
    %c0_3 = arith.constant 0 : index
    %1 = vector.load %arg6[%c0_2, %c0_3] : memref<1x32xf32, #tpu.memory_space<vmem>>, vector<1x32xf32>
    %2 = vector.shape_cast %1 : vector<1x32xf32> to vector<1x1x32xf32>
    %3 = vector.broadcast %2 : vector<1x1x32xf32> to vector<1x8x32xf32>
    %4 = arith.mulf %0, %3 : vector<1x8x32xf32>
    %cst = arith.constant dense<0.000000e+00> : vector<1x8xf32>
    %5 = vector.multi_reduction <add>, %4, %cst [2] : vector<1x8x32xf32> to vector<1x8xf32>
    %6 = vector.shape_cast %5 : vector<1x8xf32> to vector<1x8x1xf32>
    %c0_4 = arith.constant 0 : index
    %7 = memref.load %arg7[%c0_4] : memref<1xf32, #tpu.memory_space<smem>>
    %8 = vector.broadcast %7 : f32 to vector<1x8x1xf32>
    %9 = arith.addf %6, %8 : vector<1x8x1xf32>
    %10 = tpu.iota {dimensions = array<i32: 1>} : vector<1x8x1xi32>
    %c0_5 = arith.constant 0 : index
    %c0_6 = arith.constant 0 : index
    %c0_7 = arith.constant 0 : index
    %11 = vector.load %arg3[%c0_5, %c0_6, %c0_7] : memref<1x1x1xi32, #tpu.memory_space<vmem>>, vector<1x1x1xi32>
    %12 = vector.broadcast %11 : vector<1x1x1xi32> to vector<1x8x1xi32>
    %13 = arith.cmpi sge, %10, %12 : vector<1x8x1xi32>
    %cst_8 = arith.constant 1.000000e+10 : f32
    %cst_9 = arith.constant 0.000000e+00 : f32
    %14 = vector.broadcast %cst_8 : f32 to vector<1x8x1xf32>
    %15 = vector.broadcast %cst_9 : f32 to vector<1x8x1xf32>
    %16 = arith.select %13, %14, %15 : vector<1x8x1xi1>, vector<1x8x1xf32>
    %17 = arith.subf %9, %16 : vector<1x8x1xf32>
    %cst_10 = arith.constant dense<0xFF800000> : vector<1x1xf32>
    %18 = vector.multi_reduction <maximumf>, %17, %cst_10 [1] : vector<1x8x1xf32> to vector<1x1xf32>
    %19 = vector.shape_cast %18 : vector<1x1xf32> to vector<1x1x1xf32>
    %20 = vector.broadcast %19 : vector<1x1x1xf32> to vector<1x8x1xf32>
    %21 = arith.subf %17, %20 : vector<1x8x1xf32>
    %22 = math.exp %21 : vector<1x8x1xf32>
    %cst_11 = arith.constant dense<0.000000e+00> : vector<1x1xf32>
    %23 = vector.multi_reduction <add>, %22, %cst_11 [1] : vector<1x8x1xf32> to vector<1x1xf32>
    %24 = vector.shape_cast %23 : vector<1x1xf32> to vector<1x1x1xf32>
    %25 = tpu.reciprocal %24 {approx = true} : vector<1x1x1xf32> -> vector<1x1x1xf32>
    %26 = vector.broadcast %25 : vector<1x1x1xf32> to vector<1x8x1xf32>
    %27 = arith.mulf %22, %26 : vector<1x8x1xf32>
    %28 = vector.broadcast %27 : vector<1x8x1xf32> to vector<1x8x32xf32>
    %29 = arith.mulf %28, %0 : vector<1x8x32xf32>
    %cst_12 = arith.constant dense<0.000000e+00> : vector<1x32xf32>
    %30 = vector.multi_reduction <add>, %29, %cst_12 [1] : vector<1x8x32xf32> to vector<1x32xf32>
    %31 = vector.shape_cast %30 : vector<1x32xf32> to vector<1x1x32xf32>
    %32 = tpu.iota {dimensions = array<i32: 1>} : vector<4x16xi32>
    %c0_13 = arith.constant 0 : index
    %c0_14 = arith.constant 0 : index
    %33 = vector.load %arg4[%c0_13, %c0_14] : memref<4x1xi32, #tpu.memory_space<vmem>>, vector<4x1xi32>
    %34 = vector.broadcast %33 : vector<4x1xi32> to vector<4x16xi32>
    %35 = arith.cmpi sge, %32, %34 : vector<4x16xi32>
    %c0_15 = arith.constant 0 : index
    %c0_16 = arith.constant 0 : index
    %36 = vector.load %arg5[%c0_15, %c0_16] : memref<4x1xi32, #tpu.memory_space<vmem>>, vector<4x1xi32>
    %37 = vector.broadcast %36 : vector<4x1xi32> to vector<4x16xi32>
    %38 = arith.cmpi sle, %32, %37 : vector<4x16xi32>
    %39 = arith.andi %35, %38 : vector<4x16xi1>
    %cst_17 = arith.constant 0.000000e+00 : f32
    %cst_18 = arith.constant 1.000000e+10 : f32
    %40 = vector.broadcast %cst_17 : f32 to vector<4x16xf32>
    %41 = vector.broadcast %cst_18 : f32 to vector<4x16xf32>
    %42 = arith.select %39, %40, %41 : vector<4x16xi1>, vector<4x16xf32>
    %c0_19 = arith.constant 0 : index
    %c0_20 = arith.constant 0 : index
    %c0_21 = arith.constant 0 : index
    %43 = vector.load %arg1[%c0_19, %c0_20, %c0_21] : memref<1x32x16xf32, #tpu.memory_space<vmem>>, vector<1x32x16xf32>
    "tpu.trace_start"() <{level = 10 : i32, message = "bod,bdn->bon"}> : () -> ()
    %cst_22 = arith.constant dense<0.000000e+00> : vector<1x1x16xf32>
    %44 = tpu.matmul %31, %43, %cst_22 {dimension_numbers = #tpu.dot_dimension_numbers<[2], [1], [1], [2], [0, 0, 0, 1, 1, 2], [0], [0]>} : vector<1x1x32xf32>, vector<1x32x16xf32>, vector<1x1x16xf32> -> vector<1x1x16xf32>
    "tpu.trace_stop"() : () -> ()
    %45 = vector.shape_cast %42 : vector<4x16xf32> to vector<1x4x16xf32>
    %46 = vector.broadcast %44 : vector<1x1x16xf32> to vector<1x4x16xf32>
    %47 = arith.subf %46, %45 : vector<1x4x16xf32>
    %cst_23 = arith.constant dense<0xFF800000> : vector<1x4xf32>
    %48 = vector.multi_reduction <maximumf>, %47, %cst_23 [2] : vector<1x4x16xf32> to vector<1x4xf32>
    %49 = vector.shape_cast %48 : vector<1x4xf32> to vector<1x4x1xf32>
    %50 = vector.broadcast %49 : vector<1x4x1xf32> to vector<1x4x16xf32>
    %51 = arith.subf %47, %50 : vector<1x4x16xf32>
    %52 = math.exp %51 : vector<1x4x16xf32>
    %cst_24 = arith.constant dense<0.000000e+00> : vector<1x4xf32>
    %53 = vector.multi_reduction <add>, %52, %cst_24 [2] : vector<1x4x16xf32> to vector<1x4xf32>
    %54 = vector.shape_cast %53 : vector<1x4xf32> to vector<1x4x1xf32>
    %55 = tpu.reciprocal %54 {approx = true} : vector<1x4x1xf32> -> vector<1x4x1xf32>
    %56 = vector.broadcast %55 : vector<1x4x1xf32> to vector<1x4x16xf32>
    %57 = arith.mulf %52, %56 : vector<1x4x16xf32>
    %58 = arith.truncf %57 : vector<1x4x16xf32> to vector<1x4x16xbf16>
    %c0_25 = arith.constant 0 : index
    %c0_26 = arith.constant 0 : index
    %c0_27 = arith.constant 0 : index
    %59 = vector.load %arg1[%c0_25, %c0_26, %c0_27] : memref<1x32x16xf32, #tpu.memory_space<vmem>>, vector<1x32x16xf32>
    %60 = arith.truncf %59 : vector<1x32x16xf32> to vector<1x32x16xbf16>
    "tpu.trace_start"() <{level = 10 : i32, message = "bmn,bdn->bmd"}> : () -> ()
    %cst_28 = arith.constant dense<0.000000e+00> : vector<1x4x32xf32>
    %61 = tpu.matmul %58, %60, %cst_28 {dimension_numbers = #tpu.dot_dimension_numbers<[2], [2], [1], [1], [0, 0, 0, 1, 1, 1], [0], [0]>} : vector<1x4x16xbf16>, vector<1x32x16xbf16>, vector<1x4x32xf32> -> vector<1x4x32xf32>
    "tpu.trace_stop"() : () -> ()
    %c0_29 = arith.constant 0 : index
    %c0_30 = arith.constant 0 : index
    %c0_31 = arith.constant 0 : index
    %62 = vector.load %arg8[%c0_29, %c0_30, %c0_31] : memref<1x4x32xf32, #tpu.memory_space<vmem>>, vector<1x4x32xf32>
    tpu.vector_store %arg8[%c0_29, %c0_30, %c0_31], %61 {strides = array<i32>} : memref<1x4x32xf32, #tpu.memory_space<vmem>>, vector<1x4x32xf32>,
    return
  }
  func.func @transform_0(%arg0: i32) -> (i32, i32, i32) {
    %c0_i32 = arith.constant 0 : i32
    %c0_i32_0 = arith.constant 0 : i32
    %c0_i32_1 = arith.constant 0 : i32
    return %arg0, %c0_i32, %c0_i32_0 : i32, i32, i32
  }
  func.func @transform_1(%arg0: i32) -> (i32, i32, i32) {
    %c0_i32 = arith.constant 0 : i32
    %c0_i32_0 = arith.constant 0 : i32
    %c0_i32_1 = arith.constant 0 : i32
    return %arg0, %c0_i32, %c0_i32_0 : i32, i32, i32
  }
  func.func @transform_2(%arg0: i32) -> (i32, i32, i32) {
    %c0_i32 = arith.constant 0 : i32
    %c0_i32_0 = arith.constant 0 : i32
    %c0_i32_1 = arith.constant 0 : i32
    return %arg0, %c0_i32, %c0_i32_0 : i32, i32, i32
  }
  func.func @transform_3(%arg0: i32) -> (i32, i32) {
    %c0_i32 = arith.constant 0 : i32
    %c0_i32_0 = arith.constant 0 : i32
    %c0_i32_1 = arith.constant 0 : i32
    return %c0_i32, %c0_i32_0 : i32, i32
  }
  func.func @transform_4(%arg0: i32) -> (i32, i32) {
    %c0_i32 = arith.constant 0 : i32
    %c0_i32_0 = arith.constant 0 : i32
    %c0_i32_1 = arith.constant 0 : i32
    return %c0_i32, %c0_i32_0 : i32, i32
  }
  func.func @transform_5(%arg0: i32) -> (i32, i32) {
    %c0_i32 = arith.constant 0 : i32
    %c0_i32_0 = arith.constant 0 : i32
    %c0_i32_1 = arith.constant 0 : i32
    return %c0_i32, %c0_i32_0 : i32, i32
  }
  func.func @transform_6(%arg0: i32) -> i32 {
    %c0_i32 = arith.constant 0 : i32
    %c0_i32_0 = arith.constant 0 : i32
    return %c0_i32 : i32
  }
  func.func @transform_7(%arg0: i32) -> (i32, i32, i32) {
    %c0_i32 = arith.constant 0 : i32
    %c0_i32_0 = arith.constant 0 : i32
    %c0_i32_1 = arith.constant 0 : i32
    return %arg0, %c0_i32, %c0_i32_0 : i32, i32, i32
  }
}

</mosaic_0001>

<llo_original>
// kernel: tpu_custom_call.1
$region0: #{tpu_custom_call.1}
  #allocation0 [shape = 'u32[]', space=smem, size = 0x4, offset = 0x4, fixed_abs, tag = 'smem constant byte address 0x4 - core index']
  #allocation1 [shape = 'u32[72,128]{1,0:T(1,128)}', space=vmem, size = 0x9000, scoped, tag = 'internal scratch']
  #allocation2 [shape = 'f32[1]{0:T(128)S(6)}', space=smem, size = 0x200, scoped, tag = 'scoped memory for tpu_custom_call.1']
  %s0 = inlined_call_operand.vmem [shape: f32[2,32,16], index: 0, kind: input, shape index: {}]
  %s1 = inlined_call_operand.vmem [shape: f32[2,8,32], index: 1, kind: input, shape index: {}]
  %s2 = inlined_call_operand.vmem [shape: s32[2,1,1], index: 2, kind: input, shape index: {}]
  %s3 = inlined_call_operand.vmem [shape: s32[4,1], index: 3, kind: input, shape index: {}]
  %s4 = inlined_call_operand.vmem [shape: s32[4,1], index: 4, kind: input, shape index: {}]
  %s5 = inlined_call_operand.vmem [shape: f32[1,32], index: 5, kind: input, shape index: {}]
  %s6 = inlined_call_operand.<no memory space> [shape: f32[1], index: 6, kind: input, shape index: {}]
  %s7 = inlined_call_operand.hbm [shape: f32[2,4,32], index: 7, kind: output, shape index: {}]
  %s8 = sld [smem:[#allocation0]]
  $region61: #{tpu_custom_call.1} parent=0
    _
  %s10 = ssub.s32 1, %s8
  %s11 = scalar_select 0, %s10, %s8
  %12 = sst [smem:[#allocation2]] %s6
  $region1: #{tpu_custom_call.1} parent=0
    #allocation3 [shape = 'u8[4096]{0}', space=vmem, size = 0x1000, scoped, tag = 'output window, operand 0']
    #allocation4 [shape = 's32[2]{0}', space=sflag, size = 0x8, scoped, tag = 'scoped memory for tpu_custom_call.1']
    %13 = vsyncpa [#allocation4], 0
    %s14 = scalar_lea.sflag [#allocation4], 1
    %15 = vsyncpa %s14, 0
    loop: start=0, step=1, limit=4
    $region2: #{tpu_custom_call.1} parent=1 // loop_pre_header
      _
    $region3: #{tpu_custom_call.1} parent=1 // loop_header
      %s17 = sphi 0, %s21
      %p18 = scmp.ge.s32.totalorder %s17, 4
      %s27 = sphi 0, %s29
      %s30 = sphi 0, %s27
      %s31 = sphi 0, %s30
      %s47 = sphi 0, %s31
      %s53 = sphi 0, %s55
      %s56 = sphi 0, %s53
      %s57 = sphi 0, %s56
      %s73 = sphi 0, %s57
      %s79 = sphi 0, %s81
      %s82 = sphi 0, %s79
      %s83 = sphi 0, %s82
      %s99 = sphi 0, %s83
      %s103 = sphi 0, %s103
      %s105 = sphi 0, %s103
      %s106 = sphi 0, %s105
      %s120 = sphi 0, %s106
      %s124 = sphi 0, %s124
      %s126 = sphi 0, %s124
      %s127 = sphi 0, %s126
      %s141 = sphi 0, %s127
      %s145 = sphi 0, %s145
      %s147 = sphi 0, %s145
      %s148 = sphi 0, %s147
      %s162 = sphi 0, %s148
      %s166 = sphi 0, %s166
      %s168 = sphi 0, %s166
      %s169 = sphi 0, %s168
      %s183 = sphi 0, %s169
      %s189 = sphi 0, %s191
      %s192 = sphi 0, %s189
      %s193 = sphi 0, %s192
      %s209 = sphi 0, %s193
    $region4: #{tpu_custom_call.1} parent=1 // loop_header_branch
      %20 = sbr.rel (%p18) target = $region8
    $region5: #{tpu_custom_call.1} parent=1 // loop_body
      %s22 = ssub.s32 %s17, 1
      %s23 = ssub.s32 %s17, 2
      %s24 = sadd.s32 %s17, 1
      %s25 = ssub.s32 %s17, %s24
      %p26 = scmp.eq.s32.totalorder %s25, 0
      %s28 = sadd.s32 %s27, 1
      %s29 = scalar_select %p26, %s27, %s28
      %p32 = pneg %p26
      %p33 = scmp.eq.s32.totalorder %s17, 1
      %p34 = por %p32, %p33
      %p35 = scmp.ne.s32.totalorder %s27, %s30
      %p36 = scmp.eq.s32.totalorder %s17, 0
      %p37 = por %p35, %p36
      %p38 = scmp.ne.s32.totalorder %s27, %s30
      %p39 = scmp.eq.s32.totalorder %s22, 1
      %p40 = por %p38, %p39
      %p41 = scmp.ne.s32.totalorder %s30, %s31
      %p42 = scmp.eq.s32.totalorder %s22, 0
      %p43 = por %p41, %p42
      %p44 = scmp.ne.s32.totalorder %s30, %s31
      %p45 = scmp.eq.s32.totalorder %s23, 1
      %p46 = por %p44, %p45
      %p48 = scmp.ne.s32.totalorder %s31, %s47
      %p49 = scmp.eq.s32.totalorder %s23, 0
      %p50 = por %p48, %p49
      %s51 = ssub.s32 %s17, %s24
      %p52 = scmp.eq.s32.totalorder %s51, 0
      %s54 = sadd.s32 %s53, 1
      %s55 = scalar_select %p52, %s53, %s54
      %p58 = pneg %p52
      %p59 = scmp.eq.s32.totalorder %s17, 1
      %p60 = por %p58, %p59
      %p61 = scmp.ne.s32.totalorder %s53, %s56
      %p62 = scmp.eq.s32.totalorder %s17, 0
      %p63 = por %p61, %p62
      %p64 = scmp.ne.s32.totalorder %s53, %s56
      %p65 = scmp.eq.s32.totalorder %s22, 1
      %p66 = por %p64, %p65
      %p67 = scmp.ne.s32.totalorder %s56, %s57
      %p68 = scmp.eq.s32.totalorder %s22, 0
      %p69 = por %p67, %p68
      %p70 = scmp.ne.s32.totalorder %s56, %s57
      %p71 = scmp.eq.s32.totalorder %s23, 1
      %p72 = por %p70, %p71
      %p74 = scmp.ne.s32.totalorder %s57, %s73
      %p75 = scmp.eq.s32.totalorder %s23, 0
      %p76 = por %p74, %p75
      %s77 = ssub.s32 %s17, %s24
      %p78 = scmp.eq.s32.totalorder %s77, 0
      %s80 = sadd.s32 %s79, 1
      %s81 = scalar_select %p78, %s79, %s80
      %p84 = pneg %p78
      %p85 = scmp.eq.s32.totalorder %s17, 1
      %p86 = por %p84, %p85
      %p87 = scmp.ne.s32.totalorder %s79, %s82
      %p88 = scmp.eq.s32.totalorder %s17, 0
      %p89 = por %p87, %p88
      %p90 = scmp.ne.s32.totalorder %s79, %s82
      %p91 = scmp.eq.s32.totalorder %s22, 1
      %p92 = por %p90, %p91
      %p93 = scmp.ne.s32.totalorder %s82, %s83
      %p94 = scmp.eq.s32.totalorder %s22, 0
      %p95 = por %p93, %p94
      %p96 = scmp.ne.s32.totalorder %s82, %s83
      %p97 = scmp.eq.s32.totalorder %s23, 1
      %p98 = por %p96, %p97
      %p100 = scmp.ne.s32.totalorder %s83, %s99
      %p101 = scmp.eq.s32.totalorder %s23, 0
      %p102 = por %p100, %p101
      %s104 = sadd.s32 %s103, 1
      %p107 = scmp.eq.s32.totalorder %s17, 1
      %p108 = scmp.ne.s32.totalorder %s103, %s105
      %p109 = scmp.eq.s32.totalorder %s17, 0
      %p110 = por %p108, %p109
      %p111 = scmp.ne.s32.totalorder %s103, %s105
      %p112 = scmp.eq.s32.totalorder %s22, 1
      %p113 = por %p111, %p112
      %p114 = scmp.ne.s32.totalorder %s105, %s106
      %p115 = scmp.eq.s32.totalorder %s22, 0
      %p116 = por %p114, %p115
      %p117 = scmp.ne.s32.totalorder %s105, %s106
      %p118 = scmp.eq.s32.totalorder %s23, 1
      %p119 = por %p117, %p118
      %p121 = scmp.ne.s32.totalorder %s106, %s120
      %p122 = scmp.eq.s32.totalorder %s23, 0
      %p123 = por %p121, %p122
      %s125 = sadd.s32 %s124, 1
      %p128 = scmp.eq.s32.totalorder %s17, 1
      %p129 = scmp.ne.s32.totalorder %s124, %s126
      %p130 = scmp.eq.s32.totalorder %s17, 0
      %p131 = por %p129, %p130
      %p132 = scmp.ne.s32.totalorder %s124, %s126
      %p133 = scmp.eq.s32.totalorder %s22, 1
      %p134 = por %p132, %p133
      %p135 = scmp.ne.s32.totalorder %s126, %s127
      %p136 = scmp.eq.s32.totalorder %s22, 0
      %p137 = por %p135, %p136
      %p138 = scmp.ne.s32.totalorder %s126, %s127
      %p139 = scmp.eq.s32.totalorder %s23, 1
      %p140 = por %p138, %p139
      %p142 = scmp.ne.s32.totalorder %s127, %s141
      %p143 = scmp.eq.s32.totalorder %s23, 0
      %p144 = por %p142, %p143
      %s146 = sadd.s32 %s145, 1
      %p149 = scmp.eq.s32.totalorder %s17, 1
      %p150 = scmp.ne.s32.totalorder %s145, %s147
      %p151 = scmp.eq.s32.totalorder %s17, 0
      %p152 = por %p150, %p151
      %p153 = scmp.ne.s32.totalorder %s145, %s147
      %p154 = scmp.eq.s32.totalorder %s22, 1
      %p155 = por %p153, %p154
      %p156 = scmp.ne.s32.totalorder %s147, %s148
      %p157 = scmp.eq.s32.totalorder %s22, 0
      %p158 = por %p156, %p157
      %p159 = scmp.ne.s32.totalorder %s147, %s148
      %p160 = scmp.eq.s32.totalorder %s23, 1
      %p161 = por %p159, %p160
      %p163 = scmp.ne.s32.totalorder %s148, %s162
      %p164 = scmp.eq.s32.totalorder %s23, 0
      %p165 = por %p163, %p164
      %s167 = sadd.s32 %s166, 1
      %p170 = scmp.eq.s32.totalorder %s17, 1
      %p171 = scmp.ne.s32.totalorder %s166, %s168
      %p172 = scmp.eq.s32.totalorder %s17, 0
      %p173 = por %p171, %p172
      %p174 = scmp.ne.s32.totalorder %s166, %s168
      %p175 = scmp.eq.s32.totalorder %s22, 1
      %p176 = por %p174, %p175
      %p177 = scmp.ne.s32.totalorder %s168, %s169
      %p178 = scmp.eq.s32.totalorder %s22, 0
      %p179 = por %p177, %p178
      %p180 = scmp.ne.s32.totalorder %s168, %s169
      %p181 = scmp.eq.s32.totalorder %s23, 1
      %p182 = por %p180, %p181
      %p184 = scmp.ne.s32.totalorder %s169, %s183
      %p185 = scmp.eq.s32.totalorder %s23, 0
      %p186 = por %p184, %p185
      %s187 = ssub.s32 %s17, %s24
      %p188 = scmp.eq.s32.totalorder %s187, 0
      %s190 = sadd.s32 %s189, 1
      %s191 = scalar_select %p188, %s189, %s190
      %p194 = pneg %p188
      %p195 = scmp.eq.s32.totalorder %s17, 1
      %p196 = por %p194, %p195
      %p197 = scmp.ne.s32.totalorder %s189, %s192
      %p198 = scmp.eq.s32.totalorder %s17, 0
      %p199 = por %p197, %p198
      %p200 = scmp.ne.s32.totalorder %s189, %s192
      %p201 = scmp.eq.s32.totalorder %s22, 1
      %p202 = por %p200, %p201
      %p203 = scmp.ne.s32.totalorder %s192, %s193
      %p204 = scmp.eq.s32.totalorder %s22, 0
      %p205 = por %p203, %p204
      %p206 = scmp.ne.s32.totalorder %s192, %s193
      %p207 = scmp.eq.s32.totalorder %s23, 1
      %p208 = por %p206, %p207
      %p210 = scmp.ne.s32.totalorder %s193, %s209
      %p211 = scmp.eq.s32.totalorder %s23, 0
      %p212 = por %p210, %p211
      %p213 = scmp.le.s32.totalorder 1, %s17
      %p214 = scmp.lt.s32.totalorder %s17, 3
      %p215 = pnand %p213, %p214
      %p216 = pneg %p215
      // Predicated region
      $region9: #{tpu_custom_call.1} parent=5 // pred_check
        _
      $region10: #{tpu_custom_call.1} parent=5 // pred_check_branch
        %218 = sbr.rel (%p215) target = $region12
      $region11: #{tpu_custom_call.1} parent=5 // pred_region
        %s219 = ssub.s32 %s17, 1
        // Predicated region
        $region13: #{tpu_custom_call.1} parent=11 // pred_check
          %p220 = pneg %p116
        $region14: #{tpu_custom_call.1} parent=11 // pred_check_branch
          %222 = sbr.rel (%p220) target = $region16
        $region15: #{tpu_custom_call.1} parent=11 // pred_region
          _
        $region16: #{tpu_custom_call.1} parent=11 // pred_fallthru
          _
        // Predicated region
        $region17: #{tpu_custom_call.1} parent=11 // pred_check
          %p223 = pneg %p137
        $region18: #{tpu_custom_call.1} parent=11 // pred_check_branch
          %225 = sbr.rel (%p223) target = $region20
        $region19: #{tpu_custom_call.1} parent=11 // pred_region
          _
        $region20: #{tpu_custom_call.1} parent=11 // pred_fallthru
          _
        // Predicated region
        $region21: #{tpu_custom_call.1} parent=11 // pred_check
          %p226 = pneg %p158
        $region22: #{tpu_custom_call.1} parent=11 // pred_check_branch
          %228 = sbr.rel (%p226) target = $region24
        $region23: #{tpu_custom_call.1} parent=11 // pred_region
          _
        $region24: #{tpu_custom_call.1} parent=11 // pred_fallthru
          _
        // Predicated region
        $region25: #{tpu_custom_call.1} parent=11 // pred_check
          %p229 = pneg %p179
        $region26: #{tpu_custom_call.1} parent=11 // pred_check_branch
          %231 = sbr.rel (%p229) target = $region28
        $region27: #{tpu_custom_call.1} parent=11 // pred_region
          _
        $region28: #{tpu_custom_call.1} parent=11 // pred_fallthru
          _
      $region12: #{tpu_custom_call.1} parent=5 // pred_fallthru
        _
      %p232 = scmp.lt.s32.totalorder %s17, 2
      // Predicated region
      $region29: #{tpu_custom_call.1} parent=5 // pred_check
        %p233 = pneg %p232
      $region30: #{tpu_custom_call.1} parent=5 // pred_check_branch
        %235 = sbr.rel (%p233) target = $region32
      $region31: #{tpu_custom_call.1} parent=5 // pred_region
        // Predicated region
        $region33: #{tpu_custom_call.1} parent=31 // pred_check
          %p236 = pneg %p37
        $region34: #{tpu_custom_call.1} parent=31 // pred_check_branch
          %238 = sbr.rel (%p236) target = $region36
        $region35: #{tpu_custom_call.1} parent=31 // pred_region
          %p239 = scmp.lt.s32.totalorder %s17, 1
          %s240 = scalar_select %p239, %s17, 1
          %s241 = smul.addr %s240, 4
          %s242 = smul.addr %s241, 8
          %s243 = scalar_lea.vmem %s0, %s242
        $region36: #{tpu_custom_call.1} parent=31 // pred_fallthru
          _
        // Predicated region
        $region37: #{tpu_custom_call.1} parent=31 // pred_check
          %p244 = pneg %p63
        $region38: #{tpu_custom_call.1} parent=31 // pred_check_branch
          %246 = sbr.rel (%p244) target = $region40
        $region39: #{tpu_custom_call.1} parent=31 // pred_region
          %p247 = scmp.lt.s32.totalorder %s17, 1
          %s248 = scalar_select %p247, %s17, 1
          %s249 = smul.addr %s248, 8
          %s250 = scalar_lea.vmem %s1, %s249
        $region40: #{tpu_custom_call.1} parent=31 // pred_fallthru
          _
        // Predicated region
        $region41: #{tpu_custom_call.1} parent=31 // pred_check
          %p251 = pneg %p89
        $region42: #{tpu_custom_call.1} parent=31 // pred_check_branch
          %253 = sbr.rel (%p251) target = $region44
        $region43: #{tpu_custom_call.1} parent=31 // pred_region
          %p254 = scmp.lt.s32.totalorder %s17, 1
          %s255 = scalar_select %p254, %s17, 1
          %s256 = scalar_lea.vmem %s2, %s255
        $region44: #{tpu_custom_call.1} parent=31 // pred_fallthru
          _
      $region32: #{tpu_custom_call.1} parent=5 // pred_fallthru
        _
      %p257 = scmp.le.s32.totalorder 1, %s17
      %p258 = scmp.lt.s32.totalorder %s17, 3
      %p259 = pnand %p257, %p258
      %p260 = pneg %p259
      // Predicated region
      $region45: #{tpu_custom_call.1} parent=5 // pred_check
        _
      $region46: #{tpu_custom_call.1} parent=5 // pred_check_branch
        %262 = sbr.rel (%p259) target = $region48
      $region47: #{tpu_custom_call.1} parent=5 // pred_region
        %s263 = ssub.s32 %s17, 1
        %p264 = scmp.lt.s32.totalorder %s22, 1
        %s265 = scalar_select %p264, %s22, 1
        %s266 = smul.addr %s265, 4
        %s267 = smul.addr %s266, 8
        %s268 = scalar_lea.vmem %s0, %s267
        %p269 = pneg %p43
        %p270 = pneg %p40
        %p271 = scmp.lt.s32.totalorder %s22, 1
        %s272 = scalar_select %p271, %s22, 1
        %s273 = smul.addr %s272, 8
        %s274 = scalar_lea.vmem %s1, %s273
        %p275 = pneg %p69
        %p276 = pneg %p66
        %p277 = scmp.lt.s32.totalorder %s22, 1
        %s278 = scalar_select %p277, %s22, 1
        %s279 = scalar_lea.vmem %s2, %s278
        %p280 = pneg %p95
        %p281 = pneg %p92
        %p282 = pneg %p116
        %p283 = pneg %p113
        %p284 = pneg %p137
        %p285 = pneg %p134
        %p286 = pneg %p158
        %p287 = pneg %p155
        %p288 = pneg %p179
        %p289 = pneg %p176
        %p290 = pneg %p205
        %p291 = pneg %p202
        %s292 = sand.u32 %s192, 1
        %s293 = scalar_lea.sflag [#allocation4], %s292
        %s294 = sand.u32 %s192, 1
        %s295 = smul.addr %s294, 4
        %s296 = scalar_lea.vmem [#allocation3], %s295
        %p297 = scmp.lt.s32.totalorder %s22, 1
        %s298 = scalar_select %p297, %s22, 1
        %s299 = smul.addr %s298, 4
        %s300 = smul.addr %s299, 8
        %s301 = scalar_lea.vmem %s0, %s300
        %p302 = scmp.lt.s32.totalorder %s22, 1
        %s303 = scalar_select %p302, %s22, 1
        %s304 = smul.addr %s303, 8
        %s305 = scalar_lea.vmem %s1, %s304
        %p306 = scmp.lt.s32.totalorder %s22, 1
        %s307 = scalar_select %p306, %s22, 1
        %s308 = scalar_lea.vmem %s2, %s307
        %v310 = vld [vmem:[%s305] sm:$0xff]
        %v311 = vld [vmem:[%s5] sm:$0x1]
        %v313 = vperm.slane %v311, 0
        %v315 = vmul.f32 %v310, %v313
        %vm316 = vcmask 261120
        %v317 = vsel %vm316, %v315, 0.0
        %318 = vadd.xlane.f32.xlu0 %v317
        %v319 = vpop.xlane.xlu0 %318
        %s320 = sld [smem:[#allocation2]]
        %v321 = vstv %s320
        %v322 = vadd.f32 %v319, %v321
        %v323 = vlaneseq
        %v324 = vshrl.u32 %v323, 7
        %v325 = vld [vmem:[%s308] sm:$0x1]
        %v326 = vperm.slane %v325, 0
        %vm327 = vcmp.ge.s32.totalorder %v324, %v326
        %v328 = vsel %vm327, 1e+10, 0.0
        %v329 = vsub.f32 %v322, %v328
        %vm330 = vcmask 7168
        %v331 = vsel %vm330, %v329, -inf
        %v332 = vrot.slane %v331, 4
        %v333 = vmax.f32 %v331, %v332
        %v334 = vrot.slane %v333, 2
        %v335 = vmax.f32 %v333, %v334
        %v336 = vrot.slane %v335, 1
        %v337 = vmax.f32 %v335, %v336
        %v338 = vsub.f32 %v329, %v337
        %v339 = vmul.f32 %v338, 1.442695
        %v340 = vpow.pop %v339
        %v341 = vsel %vm330, %v340, 0.0
        %v342 = vrot.slane %v341, 4
        %v343 = vadd.f32 %v341, %v342
        %v344 = vrot.slane %v343, 2
        %v345 = vadd.f32 %v343, %v344
        %v346 = vrot.slane %v345, 1
        %v347 = vadd.f32 %v345, %v346
        %v348 = vrcp.pop %v347
        %v349 = vmul.f32 %v340, %v348
        %351 = vset.pattern.permute.xlu0 0
        %352 = vperm.xlu0 %351, %v349
        %v353 = vpop.permute.xlu0 %352
        %v355 = vmul.f32 %v353, %v310
        %v356 = vsel %vm316, %v355, 0.0
        %v357 = vrot.slane %v356, 4
        %v358 = vadd.f32 %v356, %v357
        %v359 = vrot.slane %v358, 2
        %v360 = vadd.f32 %v358, %v359
        %v361 = vrot.slane %v360, 1
        %v362 = vadd.f32 %v360, %v361
        %v363 = vlaneseq
        %v364 = vand.u32 %v363, 127
        %v365 = vld [vmem:[%s3] sm:$0xf]
        %366 = vset.pattern.permute.xlu0 0
        %367 = vperm.xlu0 %366, %v365
        %v368 = vpop.permute.xlu0 %367
        %vm369 = vcmp.ge.s32.totalorder %v364, %v368
        %v370 = vld [vmem:[%s4] sm:$0xf]
        %371 = vset.pattern.permute.xlu0 0
        %372 = vperm.xlu0 %371, %v370
        %v373 = vpop.permute.xlu0 %372
        %vm374 = vcmp.le.s32.totalorder %v364, %v373
        %vm375 = vmand %vm369, %vm374
        %v376 = vsel %vm375, 0.0, 1e+10
        %v377 = vld [vmem:[%s301] sm:$0xff]
        %v378 = vld [vmem:[%s301 + $0x8] sm:$0xff]
        %v379 = vld [vmem:[%s301 + $0x10] sm:$0xff]
        %v380 = vld [vmem:[%s301 + $0x18] sm:$0xff]
        %v382 = vsel %vm316, %v362, 0
        %384 = vmatpush.msra.mxu0 0.0
        %385 = vmatpush.msra.mxu0 0.0
        %386 = vmatpush.msra.mxu0 0.0
        %387 = vmatpush.msra.mxu0 0.0
        %388 = vmatpush.msra.mxu0 0.0
        %389 = vmatpush.msra.mxu0 0.0
        %390 = vmatpush.msra.mxu0 0.0
        %391 = vmatpush.msra.mxu0 0.0
        %392 = vmatpush.msra.mxu0 0.0
        %393 = vmatpush.msra.mxu0 0.0
        %394 = vmatpush.msra.mxu0 0.0
        %395 = vmatpush.msra.mxu0 0.0
        %396 = vmatpush.msra.mxu0 %v380
        %397 = vmatpush.msra.mxu0 %v379
        %398 = vmatpush.msra.mxu0 %v378
        %399 = vmatpush.msra.mxu0 %v377
        %400 = vmatmul.f32.gmra.mxu0 %v382
        %v401 = vpop.f32.mrf.mxu0
        %v402 = vadd.f32 0.0, %v401
        %403 = vdwg.mxu0
        %v404 = vperm.slane %v402, 0
        %v405 = vsub.f32 %v404, %v376
        %vm406 = vcmask 125952
        %v407 = vsel %vm406, %v405, -inf
        %408 = vmax.xlane.f32.xlu0 %v407
        %v409 = vpop.xlane.xlu0 %408
        %v410 = vsub.f32 %v405, %v409
        %v411 = vmul.f32 %v410, 1.442695
        %v412 = vpow.pop %v411
        %v413 = vsel %vm406, %v412, 0.0
        %414 = vadd.xlane.f32.xlu0 %v413
        %v415 = vpop.xlane.xlu0 %414
        %v416 = vrcp.pop %v415
        %v417 = vmul.f32 %v412, %v416
        %v418 = vpack.c.bf16 %v417, %v417
        %v419 = vld [vmem:[%s301] sm:$0xff]
        %v420 = vld [vmem:[%s301 + $0x8] sm:$0xff]
        %v421 = vld [vmem:[%s301 + $0x10] sm:$0xff]
        %v422 = vld [vmem:[%s301 + $0x18] sm:$0xff]
        %v423 = vpack.c.bf16 %v419, %v419
        %v424 = vpack.c.bf16 %v420, %v420
        %v425 = vpack.c.bf16 %v421, %v421
        %v426 = vpack.c.bf16 %v422, %v422
        %v431 = vunpack.c.l.b16 %v423
        %v432 = vunpack.c.l.b16 %v424
        %v433 = vunpack.c.l.b16 %v425
        %v434 = vunpack.c.l.b16 %v426
        %v435 = vpack.c.b16 %v432, %v431
        %v436 = vpack.c.b16 %v434, %v433
        %vm437 = vcmask 130048
        %v439 = vsel %vm437, %v418, 0
        %v442 = vsel %vm437, %v435, 0
        %v445 = vsel %vm437, %v436, 0
        %447 = vmatpush.bf16.xpose.msra.mxu0 0
        %448 = vmatpush.bf16.xpose.msra.mxu0 0
        %449 = vmatpush.bf16.xpose.msra.mxu0 0
        %450 = vmatpush.bf16.xpose.msra.mxu0 0
        %451 = vmatpush.bf16.xpose.msra.mxu0 0
        %452 = vmatpush.bf16.xpose.msra.mxu0 0
        %453 = vmatpush.bf16.xpose.msra.mxu0 %v445
        %454 = vmatpush.bf16.xpose.msra.mxu0 %v442
        %455 = vmatmul.bf16.gmra.mxu0 %v439
        %v456 = vpop.f32.mrf.mxu0
        %v457 = vadd.f32 0.0, %v456
        %v458 = vpop.f32.mrf.mxu0
        %459 = vdwg.mxu0
        %vm460 = vcmask 257024
        %461 = vst.msk [vmem:[%s296] sm:$0xf] %vm460, %v457
        %s462 = sand.u32 %s192, 1
        %s463 = scalar_lea.sflag [#allocation4], %s462
        %s464 = sand.u32 %s192, 1
        %s465 = smul.addr %s464, 4
        %s466 = scalar_lea.vmem [#allocation3], %s465
        // Predicated region
        $region49: #{tpu_custom_call.1} parent=47 // pred_check
          %p467 = pneg %p202
        $region50: #{tpu_custom_call.1} parent=47 // pred_check_branch
          %469 = sbr.rel (%p467) target = $region52
        $region51: #{tpu_custom_call.1} parent=47 // pred_region
          %471 = vsyncadd %s463, 0
          %s472 = smul.addr %s22, 4
          %s473 = scalar_lea.hbm %s7, %s472
          %s475 = sshll.u32 %s466, 4
          %s476 = int_to_ptr.vmem [resolvable:$true] %s475
          %s477 = sshll.u32 %s473, 4
          %s478 = int_to_ptr.hbm [resolvable:$true] %s477
          %480 = dma.vmem_to_hbm [thread:$0]  %s476, 64, %s478, %s463
        $region52: #{tpu_custom_call.1} parent=47 // pred_fallthru
          _
      $region48: #{tpu_custom_call.1} parent=5 // pred_fallthru
        _
      %p481 = scmp.le.s32.totalorder 2, %s17
      // Predicated region
      $region53: #{tpu_custom_call.1} parent=5 // pred_check
        %p482 = pneg %p481
      $region54: #{tpu_custom_call.1} parent=5 // pred_check_branch
        %484 = sbr.rel (%p482) target = $region56
      $region55: #{tpu_custom_call.1} parent=5 // pred_region
        %s485 = ssub.s32 %s17, 2
        // Predicated region
        $region57: #{tpu_custom_call.1} parent=55 // pred_check
          %p486 = pneg %p208
        $region58: #{tpu_custom_call.1} parent=55 // pred_check_branch
          %488 = sbr.rel (%p486) target = $region60
        $region59: #{tpu_custom_call.1} parent=55 // pred_region
          %s489 = sand.u32 %s193, 1
          %s490 = scalar_lea.sflag [#allocation4], %s489
          %s491 = sand.u32 %s193, 1
          %s492 = smul.addr %s491, 4
          %s493 = scalar_lea.vmem [#allocation3], %s492
          %495 = dma.done %s490, 64
        $region60: #{tpu_custom_call.1} parent=55 // pred_fallthru
          _
      $region56: #{tpu_custom_call.1} parent=5 // pred_fallthru
        _
    $region6: #{tpu_custom_call.1} parent=1 // loop_footer
      %s21 = sadd.s32 1, %s17
    $region7: #{tpu_custom_call.1} parent=1 // loop_footer_branch
      %16 = sbr.rel target = $region3
    $region8: #{tpu_custom_call.1} parent=1 // loop_exit
      _
    %496 = vsyncpa [#allocation4], 1
    %s497 = scalar_lea.sflag [#allocation4], 1
    %498 = vsyncpa %s497, 1

</llo_original>
